<compile_context>
chip_gen: v5e
topology: v5e:2x2
jax: 0.10.0
libtpu: 0.0.40
codegen_flags: <defaults>
</compile_context>

<pallas_src>
import functools
import math

import jax
import jax.numpy as jnp
from jax.experimental import pallas as pl
from jax.experimental.pallas import tpu as pltpu

LN_EPS = 1e-5  # torch.nn.LayerNorm default eps


def _layer_norm(x, gamma, beta):
    # x: (T, D) f32, gamma/beta: (1, D) f32.  Biased variance (PyTorch LN).
    mean = jnp.mean(x, axis=-1, keepdims=True)
    var = jnp.mean(jnp.square(x - mean), axis=-1, keepdims=True)
    return (x - mean) * jax.lax.rsqrt(var + LN_EPS) * gamma + beta


def _vmem_capacity_bytes():
    try:
        info = pltpu.get_tpu_info()
        cap = getattr(info, "vmem_capacity_bytes", None)
        if cap:
            return int(cap)
    except Exception:
        pass
    return 64 << 20  # conservative default (v7x per-TC VMEM)


# --------------------------- K/V projection prepass ---------------------------
def kv_proj_kernel(x_ref, wkv_ref, bkv_ref, k_ref, v_ref):
    f32, bf16 = jnp.float32, jnp.bfloat16
    x = x_ref[0]                                       # (TS, D) f32
    D = x.shape[-1]
    kv = jnp.dot(x.astype(bf16), wkv_ref[...],
                 preferred_element_type=f32) + bkv_ref[...]        # (TS, 2D) f32
    k_ref[0] = kv[:, :D].astype(bf16)
    v_ref[0] = kv[:, D:].astype(bf16)


def kv_projection(x, wkv_bf16, bkv_f32, ts):
    B, S, D = x.shape
    n_s = S // ts

    def const_spec(p):
        nd = p.ndim
        return pl.BlockSpec(p.shape, lambda b, si, _nd=nd: (0,) * _nd,
                            pipeline_mode=pl.Buffered(1))

    return pl.pallas_call(
        kv_proj_kernel,
        out_shape=(jax.ShapeDtypeStruct((B, S, D), jnp.bfloat16),
                   jax.ShapeDtypeStruct((B, S, D), jnp.bfloat16)),
        grid_spec=pltpu.PrefetchScalarGridSpec(
            num_scalar_prefetch=0,
            grid=(B, n_s),
            in_specs=[pl.BlockSpec((1, ts, D), lambda b, si: (b, si, 0)),
                      const_spec(wkv_bf16), const_spec(bkv_f32)],
            out_specs=(pl.BlockSpec((1, ts, D), lambda b, si: (b, si, 0)),
                       pl.BlockSpec((1, ts, D), lambda b, si: (b, si, 0)))),
        compiler_params=pltpu.CompilerParams(
            dimension_semantics=("parallel", "parallel")),
    )(x, wkv_bf16, bkv_f32)


# ------------------------------- main encoder step ----------------------------
def encoder_block_kernel(num_heads,
                         xq_ref, k_ref, v_ref,
                         wq_ref, bq_ref, wo_ref, bo_ref,
                         g1_ref, be1_ref,
                         w1_ref, bf1_ref, w2_ref, bf2_ref,
                         g2_ref, be2_ref,
                         o_ref,
                         ctx_ref):
    f32, bf16 = jnp.float32, jnp.bfloat16

    x_q = xq_ref[0]                      # (TQ, D) f32 — query tile / residual
    k = k_ref[0]                         # (S,  D) bf16 — precomputed keys
    v = v_ref[0]                         # (S,  D) bf16 — precomputed values
    TQ, D = x_q.shape
    H = num_heads
    dh = D // H
    scale = 1.0 / math.sqrt(dh)

    # --- Q projection (bf16 operands, f32 accumulation); fold 1/sqrt(dh) in --
    q = jnp.dot(x_q.astype(bf16), wq_ref[...],
                preferred_element_type=f32) + bq_ref[...]           # (TQ, D) f32
    q = (q * scale).astype(bf16)

    # --- multi-head attention -------------------------------------------------
    # Head contexts are written into the lane slices of one (TQ, D) bf16 buffer
    # so the output projection is a single K=D matmul against bf16 Wo.
    # TODO(synk): batch heads in one dot_general when dh >= 128.
    for h in range(H):
        sl = slice(h * dh, (h + 1) * dh)
        s = jax.lax.dot_general(q[:, sl], k[:, sl], (((1,), (1,)), ((), ())),
                                preferred_element_type=f32)          # (TQ, S)
        # TODO(synk): attention-mask path (module forward uses mask=None here)
        s = s - jnp.max(s, axis=-1, keepdims=True)
        p = jnp.exp(s)
        p = p * pl.reciprocal(jnp.sum(p, axis=-1, keepdims=True), approx=True)
        ctx_ref[:, sl] = jnp.dot(p.astype(bf16), v[:, sl],
                                 preferred_element_type=f32).astype(bf16)

    attn_out = jnp.dot(ctx_ref[...], wo_ref[...],
                       preferred_element_type=f32) + bo_ref[...]     # (TQ, D)

    # --- add & norm 1 (f32) ---------------------------------------------------
    h1 = _layer_norm(x_q + attn_out, g1_ref[...], be1_ref[...])

    # --- feed forward: Linear -> ReLU -> Linear (bf16 matmuls, f32 elsewhere) -
    ff = jnp.dot(h1.astype(bf16), w1_ref[...],
                 preferred_element_type=f32) + bf1_ref[...]
    ff = jnp.maximum(ff, 0.0)
    ff = jnp.dot(ff.astype(bf16), w2_ref[...],
                 preferred_element_type=f32) + bf2_ref[...]

    # --- add & norm 2 ---------------------------------------------------------
    o_ref[0] = _layer_norm(h1 + ff, g2_ref[...], be2_ref[...])


def encoder_block(x, params, num_heads, tq=None):
    (wq, bq, wk, bk, wv, bv, wo, bo,
     g1, be1, w1, bf1, w2, bf2, g2, be2) = params
    B, S, D = x.shape
    DFF = w1.shape[1]
    H = num_heads
    assert D % H == 0

    vmem_cap = _vmem_capacity_bytes()
    big_vmem = vmem_cap >= (96 << 20)          # v5e/v6e 128 MiB vs v7x 64 MiB

    if tq is None:
        tq = min(S, 512 if big_vmem else 256)  # query-tile size
    assert S % tq == 0, "ragged / tail query tiles not supported"
    n_q_tiles = S // tq

    bf16 = jnp.bfloat16

    # --- prepass: K/V projection hoisted out of the per-query-tile grid ------
    wkv = jnp.concatenate([wk, wv], axis=1).astype(bf16)   # (D, 2D) bf16
    bkv = jnp.concatenate([bk, bv], axis=1)                # (1, 2D) f32
    k_bf, v_bf = kv_projection(x, wkv, bkv, ts=tq)         # (B,S,D) bf16 each

    weights = (
        wq.astype(bf16), bq,
        wo.astype(bf16), bo,                               # bf16 Wo, single matmul
        g1, be1,
        w1.astype(bf16), bf1, w2.astype(bf16), bf2,
        g2, be2,
    )

    def const_spec(p):
        nd = p.ndim
        # Block index never changes across the grid -> single VMEM buffer.
        return pl.BlockSpec(p.shape, lambda b, qi, _nd=nd: (0,) * _nd,
                            pipeline_mode=pl.Buffered(1))

    in_specs = [
        pl.BlockSpec((1, tq, D), lambda b, qi: (b, qi, 0)),   # query / residual tile (f32)
        pl.BlockSpec((1, S, D), lambda b, qi: (b, 0, 0)),     # K (bf16, per batch)
        pl.BlockSpec((1, S, D), lambda b, qi: (b, 0, 0)),     # V (bf16, per batch)
    ]
    in_specs += [const_spec(p) for p in weights]
    out_specs = pl.BlockSpec((1, tq, D), lambda b, qi: (b, qi, 0))

    # Generation-aware VMEM budget: estimated footprint, clamped to ~7/8 of
    # this chip's VMEM (56 MiB on v7x, 112 MiB on v5e/v6e).
    def nbytes(a):
        return a.size * a.dtype.itemsize
    weight_bytes = sum(nbytes(p) for p in weights)            # single-buffered
    io_bytes = 2 * 2 * (tq * D * 4) + 2 * 2 * (S * D * 2)     # x_q+out f32, K+V bf16 (x2 bufs)
    interm_bytes = (6 * tq * D + 2 * tq * S + 2 * tq * DFF) * 4 + tq * D * 2
    vmem_limit = weight_bytes + io_bytes + interm_bytes + (8 << 20)
    vmem_limit = int(min(max(vmem_limit, 16 << 20), (vmem_cap * 7) // 8))

    kernel = functools.partial(encoder_block_kernel, H)
    return pl.pallas_call(
        kernel,
        out_shape=jax.ShapeDtypeStruct((B, S, D), jnp.float32),
        grid_spec=pltpu.PrefetchScalarGridSpec(
            num_scalar_prefetch=0,
            grid=(B, n_q_tiles),
            in_specs=in_specs,
            out_specs=out_specs,
            scratch_shapes=[pltpu.VMEM((tq, D), jnp.bfloat16)]),   # head-context buffer
        compiler_params=pltpu.CompilerParams(
            dimension_semantics=("parallel", "parallel"),
            vmem_limit_bytes=vmem_limit),
    )(x, k_bf, v_bf, *weights)


# ----------------------------- pure-JAX reference -----------------------------
def encoder_block_ref(x, params, num_heads):
    (wq, bq, wk, bk, wv, bv, wo, bo,
     g1, be1, w1, bf1, w2, bf2, g2, be2) = params
    B, S, D = x.shape
    H, dh = num_heads, D // num_heads

    def ln(t, g, b):
        m = jnp.mean(t, axis=-1, keepdims=True)
        var = jnp.mean(jnp.square(t - m), axis=-1, keepdims=True)
        return (t - m) * jax.lax.rsqrt(var + LN_EPS) * g + b

    q = (x @ wq + bq).reshape(B, S, H, dh).transpose(0, 2, 1, 3)
    k = (x @ wk + bk).reshape(B, S, H, dh).transpose(0, 2, 1, 3)
    v = (x @ wv + bv).reshape(B, S, H, dh).transpose(0, 2, 1, 3)
    s = jnp.einsum('bhqd,bhkd->bhqk', q, k) / jnp.sqrt(jnp.float32(dh))
    p = jax.nn.softmax(s, axis=-1)
    ctx = jnp.einsum('bhqk,bhkd->bhqd', p, v).transpose(0, 2, 1, 3).reshape(B, S, D)
    attn_out = ctx @ wo + bo
    h1 = ln(x + attn_out, g1, be1)
    ff = jnp.maximum(h1 @ w1 + bf1, 0.0) @ w2 + bf2
    return ln(h1 + ff, g2, be2)


if __name__ == "__main__":
    B, S, D, H = 2, 8, 32, 4
    DFF = 4 * D  # FeedForward hidden dim (paper uses 4 * d_model)

    key = jax.random.PRNGKey(0)
    keys = jax.random.split(key, 16)

    def w(k, shape, scale=0.02):
        return (scale * jax.random.normal(k, shape)).astype(jnp.float32)

    params = (
        w(keys[0], (D, D)), w(keys[1], (1, D)),          # Wq, bq
        w(keys[2], (D, D)), w(keys[3], (1, D)),          # Wk, bk
        w(keys[4], (D, D)), w(keys[5], (1, D)),          # Wv, bv
        w(keys[6], (D, D)), w(keys[7], (1, D)),          # Wo, bo
        jnp.ones((1, D), jnp.float32), jnp.zeros((1, D), jnp.float32),   # LN1
        w(keys[8], (D, DFF)), w(keys[9], (1, DFF)),      # FF W1, b1
        w(keys[10], (DFF, D)), w(keys[11], (1, D)),      # FF W2, b2
        jnp.ones((1, D), jnp.float32), jnp.zeros((1, D), jnp.float32),   # LN2
    )

    x = jax.random.normal(keys[12], (B, S, D), dtype=jnp.float32)

    out = encoder_block(x, params, H)
    out = jax.block_until_ready(out)

    ref = encoder_block_ref(x, params, H)
    assert out.shape == (B, S, D)
    # bf16 matmul operands + approx reciprocal -> loosened tolerance vs f32 ref.
    assert jnp.allclose(out, ref, atol=2e-2, rtol=2e-2), "mismatch vs reference"

    print("KERNEL_OK")
</pallas_src>

<mosaic_0001>
module attributes {stable_mosaic.version = 11 : i64} {
  func.func @kv_proj_kernel(%arg0: i32, %arg1: i32, %arg2: memref<1x8x32xf32, #tpu.memory_space<vmem>>, %arg3: memref<32x64xbf16, #tpu.memory_space<vmem>>, %arg4: memref<1x64xf32, #tpu.memory_space<vmem>>, %arg5: memref<1x8x32xbf16, #tpu.memory_space<vmem>>, %arg6: memref<1x8x32xbf16, #tpu.memory_space<vmem>>) attributes {dimension_semantics = [#tpu.dimension_semantics<parallel>, #tpu.dimension_semantics<parallel>], iteration_bounds = array<i64: 2, 1>, scalar_prefetch = 0 : i64, scratch_operands = 0 : i64, tpu.core_type = #tpu.core_type<tc>, window_params = [{transform_indices = @transform_0, window_bounds = array<i64: 1, 8, 32>}, {pipeline_mode = #tpu.pipeline_mode<synchronous>, transform_indices = @transform_1, window_bounds = array<i64: 32, 64>}, {pipeline_mode = #tpu.pipeline_mode<synchronous>, transform_indices = @transform_2, window_bounds = array<i64: 1, 64>}, {transform_indices = @transform_3, window_bounds = array<i64: 1, 8, 32>}, {transform_indices = @transform_4, window_bounds = array<i64: 1, 8, 32>}]} {
    %c0 = arith.constant 0 : index
    %c0_0 = arith.constant 0 : index
    %c0_1 = arith.constant 0 : index
    %0 = vector.load %arg2[%c0, %c0_0, %c0_1] : memref<1x8x32xf32, #tpu.memory_space<vmem>>, vector<1x8x32xf32>
    %1 = vector.shape_cast %0 : vector<1x8x32xf32> to vector<8x32xf32>
    %2 = arith.truncf %1 : vector<8x32xf32> to vector<8x32xbf16>
    %c0_2 = arith.constant 0 : index
    %c0_3 = arith.constant 0 : index
    %3 = vector.load %arg3[%c0_2, %c0_3] : memref<32x64xbf16, #tpu.memory_space<vmem>>, vector<32x64xbf16>
    %cst = arith.constant dense<0.000000e+00> : vector<8x64xf32>
    %4 = tpu.matmul %2, %3, %cst {dimension_numbers = #tpu.dot_dimension_numbers<[1], [0], [0], [1], [0, 0, 1, 1], [], []>} : vector<8x32xbf16>, vector<32x64xbf16>, vector<8x64xf32> -> vector<8x64xf32>
    %c0_4 = arith.constant 0 : index
    %c0_5 = arith.constant 0 : index
    %5 = vector.load %arg4[%c0_4, %c0_5] : memref<1x64xf32, #tpu.memory_space<vmem>>, vector<1x64xf32>
    %6 = vector.broadcast %5 : vector<1x64xf32> to vector<8x64xf32>
    %7 = arith.addf %4, %6 : vector<8x64xf32>
    %8 = vector.extract_strided_slice %7 {offsets = [0, 0], sizes = [8, 32], strides = [1, 1]} : vector<8x64xf32> to vector<8x32xf32>
    %9 = arith.truncf %8 : vector<8x32xf32> to vector<8x32xbf16>
    %c0_6 = arith.constant 0 : index
    %c0_7 = arith.constant 0 : index
    %c0_8 = arith.constant 0 : index
    %10 = vector.load %arg5[%c0_6, %c0_7, %c0_8] : memref<1x8x32xbf16, #tpu.memory_space<vmem>>, vector<1x8x32xbf16>
    %11 = vector.shape_cast %10 : vector<1x8x32xbf16> to vector<8x32xbf16>
    %12 = vector.shape_cast %9 : vector<8x32xbf16> to vector<1x8x32xbf16>
    tpu.vector_store %arg5[%c0_6, %c0_7, %c0_8], %12 {strides = array<i32>} : memref<1x8x32xbf16, #tpu.memory_space<vmem>>, vector<1x8x32xbf16>,
    %13 = vector.extract_strided_slice %7 {offsets = [0, 32], sizes = [8, 32], strides = [1, 1]} : vector<8x64xf32> to vector<8x32xf32>
    %14 = arith.truncf %13 : vector<8x32xf32> to vector<8x32xbf16>
    %c0_9 = arith.constant 0 : index
    %c0_10 = arith.constant 0 : index
    %c0_11 = arith.constant 0 : index
    %15 = vector.load %arg6[%c0_9, %c0_10, %c0_11] : memref<1x8x32xbf16, #tpu.memory_space<vmem>>, vector<1x8x32xbf16>
    %16 = vector.shape_cast %15 : vector<1x8x32xbf16> to vector<8x32xbf16>
    %17 = vector.shape_cast %14 : vector<8x32xbf16> to vector<1x8x32xbf16>
    tpu.vector_store %arg6[%c0_9, %c0_10, %c0_11], %17 {strides = array<i32>} : memref<1x8x32xbf16, #tpu.memory_space<vmem>>, vector<1x8x32xbf16>,
    return
  }
  func.func @transform_0(%arg0: i32, %arg1: i32) -> (i32, i32, i32) {
    %c0_i32 = arith.constant 0 : i32
    %c0_i32_0 = arith.constant 0 : i32
    return %arg0, %arg1, %c0_i32 : i32, i32, i32
  }
  func.func @transform_1(%arg0: i32, %arg1: i32) -> (i32, i32) {
    %c0_i32 = arith.constant 0 : i32
    %c0_i32_0 = arith.constant 0 : i32
    %c0_i32_1 = arith.constant 0 : i32
    return %c0_i32, %c0_i32_0 : i32, i32
  }
  func.func @transform_2(%arg0: i32, %arg1: i32) -> (i32, i32) {
    %c0_i32 = arith.constant 0 : i32
    %c0_i32_0 = arith.constant 0 : i32
    %c0_i32_1 = arith.constant 0 : i32
    return %c0_i32, %c0_i32_0 : i32, i32
  }
  func.func @transform_3(%arg0: i32, %arg1: i32) -> (i32, i32, i32) {
    %c0_i32 = arith.constant 0 : i32
    %c0_i32_0 = arith.constant 0 : i32
    return %arg0, %arg1, %c0_i32 : i32, i32, i32
  }
  func.func @transform_4(%arg0: i32, %arg1: i32) -> (i32, i32, i32) {
    %c0_i32 = arith.constant 0 : i32
    %c0_i32_0 = arith.constant 0 : i32
    return %arg0, %arg1, %c0_i32 : i32, i32, i32
  }
}

</mosaic_0001>

<llo_original>
// kernel: tpu_custom_call.1
$region0: #{tpu_custom_call.1}
  #allocation0 [shape = 'u32[]', space=smem, size = 0x4, offset = 0x4, fixed_abs, tag = 'smem constant byte address 0x4 - core index']
  #allocation1 [shape = 'u32[72,128]{1,0:T(1,128)}', space=vmem, size = 0x9000, scoped, tag = 'internal scratch']
  %s0 = inlined_call_operand.hbm [shape: f32[2,8,32], index: 0, kind: input, shape index: {}]
  %s1 = inlined_call_operand.hbm [shape: bf16[32,64], index: 1, kind: input, shape index: {}]
  %s2 = inlined_call_operand.vmem [shape: f32[1,64], index: 2, kind: input, shape index: {}]
  %s3 = inlined_call_operand.hbm [shape: bf16[2,8,32], index: 3, kind: output, shape index: {0}]
  %s4 = inlined_call_operand.hbm [shape: bf16[2,8,32], index: 4, kind: output, shape index: {1}]
  %5 = xla_tuple %s3, %s4
  %s6 = sld [smem:[#allocation0]]
  $region61: #{tpu_custom_call.1} parent=0
    _
  %s8 = ssub.s32 1, %s6
  %s9 = scalar_select 0, %s8, %s6
  $region1: #{tpu_custom_call.1} parent=0
    #allocation2 [shape = 'u8[8192]{0}', space=vmem, size = 0x2000, scoped, tag = 'input window, operand 0']
    #allocation3 [shape = 's32[2]{0}', space=sflag, size = 0x8, scoped, tag = 'scoped memory for tpu_custom_call.1']
    #allocation4 [shape = 's32[2]{0}', space=sflag, size = 0x8, scoped, tag = 'scoped memory for tpu_custom_call.1']
    #allocation5 [shape = 'u8[8192]{0}', space=vmem, size = 0x2000, scoped, tag = 'input window, operand 1, single buffered']
    #allocation6 [shape = 's32[1]{0}', space=sflag, size = 0x4, scoped, tag = 'scoped memory for tpu_custom_call.1']
    #allocation7 [shape = 'u8[4096]{0}', space=vmem, size = 0x1000, scoped, tag = 'output window, operand 0']
    #allocation8 [shape = 'u8[4096]{0}', space=vmem, size = 0x1000, scoped, tag = 'output window, operand 1']
    #allocation9 [shape = 's32[2]{0}', space=sflag, size = 0x8, scoped, tag = 'scoped memory for tpu_custom_call.1']
    %10 = vsyncpa [#allocation3], 0
    %s11 = scalar_lea.sflag [#allocation3], 1
    %12 = vsyncpa %s11, 0
    %13 = vsyncpa [#allocation6], 0
    %14 = vsyncpa [#allocation4], 0
    %s15 = scalar_lea.sflag [#allocation4], 1
    %16 = vsyncpa %s15, 0
    %17 = vsyncpa [#allocation9], 0
    %s18 = scalar_lea.sflag [#allocation9], 1
    %19 = vsyncpa %s18, 0
    loop: start=0, step=1, limit=4
    $region2: #{tpu_custom_call.1} parent=1 // loop_pre_header
      _
    $region3: #{tpu_custom_call.1} parent=1 // loop_header
      %s21 = sphi 0, %s25
      %p22 = scmp.ge.s32.totalorder %s21, 4
      %s28 = sphi 0, %s40
      %s29 = sphi 0, %s36
      %s30 = sphi 0, %s28
      %s31 = sphi 0, %s29
      %s32 = sphi 0, %s30
      %s33 = sphi 0, %s31
      %s45 = sphi 0, %s47
      %s48 = sphi 0, %s45
      %s49 = sphi 0, %s48
      %s65 = sphi 0, %s49
      %s69 = sphi 0, %s69
      %s71 = sphi 0, %s69
      %s72 = sphi 0, %s71
      %s86 = sphi 0, %s72
      %s90 = sphi 0, %s90
      %s92 = sphi 0, %s90
      %s93 = sphi 0, %s92
      %s107 = sphi 0, %s93
      %s115 = sphi 0, %s117
      %s118 = sphi 0, %s115
      %s119 = sphi 0, %s118
      %s135 = sphi 0, %s119
      %s143 = sphi 0, %s145
      %s146 = sphi 0, %s143
      %s147 = sphi 0, %s146
      %s163 = sphi 0, %s147
    $region4: #{tpu_custom_call.1} parent=1 // loop_header_branch
      %24 = sbr.rel (%p22) target = $region8
    $region5: #{tpu_custom_call.1} parent=1 // loop_body
      %s26 = ssub.s32 %s21, 1
      %s27 = ssub.s32 %s21, 2
      %s34 = sadd.s32 1, %s29
      %p35 = scmp.ge.s32.totalorder %s34, 1
      %s36 = scalar_select %p35, 0, %s34
      %s37 = sadd.s32 1, %s28
      %s38 = scalar_select %p35, %s37, %s28
      %p39 = scmp.ge.s32.totalorder %s38, 2
      %s40 = scalar_select %p39, 0, %s38
      %s41 = ssub.s32 %s28, %s40
      %s42 = ssub.s32 %s29, %s36
      %s43 = sor.u32 %s41, %s42
      %p44 = scmp.eq.s32.totalorder %s43, 0
      %s46 = sadd.s32 %s45, 1
      %s47 = scalar_select %p44, %s45, %s46
      %p50 = pneg %p44
      %p51 = scmp.eq.s32.totalorder %s21, 1
      %p52 = por %p50, %p51
      %p53 = scmp.ne.s32.totalorder %s45, %s48
      %p54 = scmp.eq.s32.totalorder %s21, 0
      %p55 = por %p53, %p54
      %p56 = scmp.ne.s32.totalorder %s45, %s48
      %p57 = scmp.eq.s32.totalorder %s26, 1
      %p58 = por %p56, %p57
      %p59 = scmp.ne.s32.totalorder %s48, %s49
      %p60 = scmp.eq.s32.totalorder %s26, 0
      %p61 = por %p59, %p60
      %p62 = scmp.ne.s32.totalorder %s48, %s49
      %p63 = scmp.eq.s32.totalorder %s27, 1
      %p64 = por %p62, %p63
      %p66 = scmp.ne.s32.totalorder %s49, %s65
      %p67 = scmp.eq.s32.totalorder %s27, 0
      %p68 = por %p66, %p67
      %s70 = sadd.s32 %s69, 1
      %p73 = scmp.eq.s32.totalorder %s21, 1
      %p74 = scmp.ne.s32.totalorder %s69, %s71
      %p75 = scmp.eq.s32.totalorder %s21, 0
      %p76 = por %p74, %p75
      %p77 = scmp.ne.s32.totalorder %s69, %s71
      %p78 = scmp.eq.s32.totalorder %s26, 1
      %p79 = por %p77, %p78
      %p80 = scmp.ne.s32.totalorder %s71, %s72
      %p81 = scmp.eq.s32.totalorder %s26, 0
      %p82 = por %p80, %p81
      %p83 = scmp.ne.s32.totalorder %s71, %s72
      %p84 = scmp.eq.s32.totalorder %s27, 1
      %p85 = por %p83, %p84
      %p87 = scmp.ne.s32.totalorder %s72, %s86
      %p88 = scmp.eq.s32.totalorder %s27, 0
      %p89 = por %p87, %p88
      %s91 = sadd.s32 %s90, 1
      %p94 = scmp.eq.s32.totalorder %s21, 1
      %p95 = scmp.ne.s32.totalorder %s90, %s92
      %p96 = scmp.eq.s32.totalorder %s21, 0
      %p97 = por %p95, %p96
      %p98 = scmp.ne.s32.totalorder %s90, %s92
      %p99 = scmp.eq.s32.totalorder %s26, 1
      %p100 = por %p98, %p99
      %p101 = scmp.ne.s32.totalorder %s92, %s93
      %p102 = scmp.eq.s32.totalorder %s26, 0
      %p103 = por %p101, %p102
      %p104 = scmp.ne.s32.totalorder %s92, %s93
      %p105 = scmp.eq.s32.totalorder %s27, 1
      %p106 = por %p104, %p105
      %p108 = scmp.ne.s32.totalorder %s93, %s107
      %p109 = scmp.eq.s32.totalorder %s27, 0
      %p110 = por %p108, %p109
      %s111 = ssub.s32 %s28, %s40
      %s112 = ssub.s32 %s29, %s36
      %s113 = sor.u32 %s111, %s112
      %p114 = scmp.eq.s32.totalorder %s113, 0
      %s116 = sadd.s32 %s115, 1
      %s117 = scalar_select %p114, %s115, %s116
      %p120 = pneg %p114
      %p121 = scmp.eq.s32.totalorder %s21, 1
      %p122 = por %p120, %p121
      %p123 = scmp.ne.s32.totalorder %s115, %s118
      %p124 = scmp.eq.s32.totalorder %s21, 0
      %p125 = por %p123, %p124
      %p126 = scmp.ne.s32.totalorder %s115, %s118
      %p127 = scmp.eq.s32.totalorder %s26, 1
      %p128 = por %p126, %p127
      %p129 = scmp.ne.s32.totalorder %s118, %s119
      %p130 = scmp.eq.s32.totalorder %s26, 0
      %p131 = por %p129, %p130
      %p132 = scmp.ne.s32.totalorder %s118, %s119
      %p133 = scmp.eq.s32.totalorder %s27, 1
      %p134 = por %p132, %p133
      %p136 = scmp.ne.s32.totalorder %s119, %s135
      %p137 = scmp.eq.s32.totalorder %s27, 0
      %p138 = por %p136, %p137
      %s139 = ssub.s32 %s28, %s40
      %s140 = ssub.s32 %s29, %s36
      %s141 = sor.u32 %s139, %s140
      %p142 = scmp.eq.s32.totalorder %s141, 0
      %s144 = sadd.s32 %s143, 1
      %s145 = scalar_select %p142, %s143, %s144
      %p148 = pneg %p142
      %p149 = scmp.eq.s32.totalorder %s21, 1
      %p150 = por %p148, %p149
      %p151 = scmp.ne.s32.totalorder %s143, %s146
      %p152 = scmp.eq.s32.totalorder %s21, 0
      %p153 = por %p151, %p152
      %p154 = scmp.ne.s32.totalorder %s143, %s146
      %p155 = scmp.eq.s32.totalorder %s26, 1
      %p156 = por %p154, %p155
      %p157 = scmp.ne.s32.totalorder %s146, %s147
      %p158 = scmp.eq.s32.totalorder %s26, 0
      %p159 = por %p157, %p158
      %p160 = scmp.ne.s32.totalorder %s146, %s147
      %p161 = scmp.eq.s32.totalorder %s27, 1
      %p162 = por %p160, %p161
      %p164 = scmp.ne.s32.totalorder %s147, %s163
      %p165 = scmp.eq.s32.totalorder %s27, 0
      %p166 = por %p164, %p165
      %p167 = scmp.le.s32.totalorder 1, %s21
      %p168 = scmp.lt.s32.totalorder %s21, 3
      %p169 = pnand %p167, %p168
      %p170 = pneg %p169
      // Predicated region
      $region9: #{tpu_custom_call.1} parent=5 // pred_check
        _
      $region10: #{tpu_custom_call.1} parent=5 // pred_check_branch
        %172 = sbr.rel (%p169) target = $region12
      $region11: #{tpu_custom_call.1} parent=5 // pred_region
        %s173 = ssub.s32 %s21, 1
        // Predicated region
        $region13: #{tpu_custom_call.1} parent=11 // pred_check
          %p174 = pneg %p82
        $region14: #{tpu_custom_call.1} parent=11 // pred_check_branch
          %176 = sbr.rel (%p174) target = $region16
        $region15: #{tpu_custom_call.1} parent=11 // pred_region
          %178 = vsyncadd [#allocation6], 0
          %s179 = sshll.u32 %s1, 4
          %s180 = int_to_ptr.hbm [resolvable:$true] %s179
          %s181 = sshll.u32 [#allocation5], 4
          %s182 = int_to_ptr.vmem [resolvable:$true] %s181
          %187 = dma.hbm_to_vmem [thread:$0]  %s180, 256, %s182, [#allocation6], 64, 64, 4
        $region16: #{tpu_custom_call.1} parent=11 // pred_fallthru
          _
        // Predicated region
        $region17: #{tpu_custom_call.1} parent=11 // pred_check
          %p188 = pneg %p103
        $region18: #{tpu_custom_call.1} parent=11 // pred_check_branch
          %190 = sbr.rel (%p188) target = $region20
        $region19: #{tpu_custom_call.1} parent=11 // pred_region
          _
        $region20: #{tpu_custom_call.1} parent=11 // pred_fallthru
          _
      $region12: #{tpu_custom_call.1} parent=5 // pred_fallthru
        _
      %p191 = scmp.lt.s32.totalorder %s21, 2
      // Predicated region
      $region21: #{tpu_custom_call.1} parent=5 // pred_check
        %p192 = pneg %p191
      $region22: #{tpu_custom_call.1} parent=5 // pred_check_branch
        %194 = sbr.rel (%p192) target = $region24
      $region23: #{tpu_custom_call.1} parent=5 // pred_region
        // Predicated region
        $region25: #{tpu_custom_call.1} parent=23 // pred_check
          %p195 = pneg %p55
        $region26: #{tpu_custom_call.1} parent=23 // pred_check_branch
          %197 = sbr.rel (%p195) target = $region28
        $region27: #{tpu_custom_call.1} parent=23 // pred_region
          %s198 = sand.u32 %s45, 1
          %s199 = scalar_lea.sflag [#allocation3], %s198
          %s200 = sand.u32 %s45, 1
          %s201 = smul.addr %s200, 8
          %s202 = scalar_lea.vmem [#allocation2], %s201
          %204 = vsyncadd %s199, 0
          %s205 = sadd.s32 %s29, %s28
          %s206 = smul.addr %s205, 8
          %s207 = scalar_lea.hbm %s0, %s206
          %s209 = sshll.u32 %s207, 4
          %s210 = int_to_ptr.hbm [resolvable:$true] %s209
          %s211 = sshll.u32 %s202, 4
          %s212 = int_to_ptr.vmem [resolvable:$true] %s211
          %214 = dma.hbm_to_vmem [thread:$0]  %s210, 128, %s212, %s199
        $region28: #{tpu_custom_call.1} parent=23 // pred_fallthru
          _
      $region24: #{tpu_custom_call.1} parent=5 // pred_fallthru
        _
      %p215 = scmp.le.s32.totalorder 1, %s21
      %p216 = scmp.lt.s32.totalorder %s21, 3
      %p217 = pnand %p215, %p216
      %p218 = pneg %p217
      // Predicated region
      $region29: #{tpu_custom_call.1} parent=5 // pred_check
        _
      $region30: #{tpu_custom_call.1} parent=5 // pred_check_branch
        %220 = sbr.rel (%p217) target = $region32
      $region31: #{tpu_custom_call.1} parent=5 // pred_region
        %s221 = ssub.s32 %s21, 1
        %s222 = sand.u32 %s48, 1
        %s223 = scalar_lea.sflag [#allocation3], %s222
        %s224 = sand.u32 %s48, 1
        %s225 = smul.addr %s224, 8
        %s226 = scalar_lea.vmem [#allocation2], %s225
        // Predicated region
        $region33: #{tpu_custom_call.1} parent=31 // pred_check
          %p227 = pneg %p61
        $region34: #{tpu_custom_call.1} parent=31 // pred_check_branch
          %229 = sbr.rel (%p227) target = $region36
        $region35: #{tpu_custom_call.1} parent=31 // pred_region
          %231 = dma.done %s223, 128
        $region36: #{tpu_custom_call.1} parent=31 // pred_fallthru
          _
        // Predicated region
        $region37: #{tpu_custom_call.1} parent=31 // pred_check
          %p232 = pneg %p82
        $region38: #{tpu_custom_call.1} parent=31 // pred_check_branch
          %234 = sbr.rel (%p232) target = $region40
        $region39: #{tpu_custom_call.1} parent=31 // pred_region
          %236 = dma.done [#allocation6], 256
        $region40: #{tpu_custom_call.1} parent=31 // pred_fallthru
          _
        %s237 = sand.u32 %s48, 1
        %s238 = scalar_lea.sflag [#allocation3], %s237
        %s239 = sand.u32 %s48, 1
        %s240 = smul.addr %s239, 8
        %s241 = scalar_lea.vmem [#allocation2], %s240
        %p242 = pneg %p61
        %p243 = pneg %p58
        %p244 = pneg %p82
        %p245 = pneg %p79
        %p246 = pneg %p103
        %p247 = pneg %p100
        %p248 = pneg %p131
        %p249 = pneg %p128
        %s250 = sand.u32 %s118, 1
        %s251 = scalar_lea.sflag [#allocation4], %s250
        %s252 = sand.u32 %s118, 1
        %s253 = smul.addr %s252, 4
        %s254 = scalar_lea.vmem [#allocation7], %s253
        %p255 = pneg %p159
        %p256 = pneg %p156
        %s257 = sand.u32 %s146, 1
        %s258 = scalar_lea.sflag [#allocation9], %s257
        %s259 = sand.u32 %s146, 1
        %s260 = smul.addr %s259, 4
        %s261 = scalar_lea.vmem [#allocation8], %s260
        %v263 = vld [vmem:[%s226] sm:$0xff]
        %v264 = vpack.c.bf16 %v263, %v263
        %v265 = vld [vmem:[#allocation5] sm:$0xf]
        %v266 = vld [vmem:[#allocation5 + $0x4] sm:$0xf]
        %v267 = vld [vmem:[#allocation5 + $0x8] sm:$0xf]
        %v268 = vld [vmem:[#allocation5 + $0xc] sm:$0xf]
        %v269 = vld [vmem:[%s2] sm:$0x1]
        %v271 = vperm.slane %v269, 0
        %v277 = vunpack.c.l.b16 %v265
        %v278 = vunpack.c.l.b16 %v266
        %v279 = vunpack.c.l.b16 %v267
        %v280 = vunpack.c.l.b16 %v268
        %v281 = vpack.c.b16 %v278, %v277
        %v282 = vpack.c.b16 %v280, %v279
        %vm285 = vcmask 261120
        %v287 = vsel %vm285, %v264, 0
        %289 = vmatpush.bf16.msra.mxu0 0
        %290 = vmatpush.bf16.msra.mxu0 0
        %291 = vmatpush.bf16.msra.mxu0 0
        %292 = vmatpush.bf16.msra.mxu0 0
        %293 = vmatpush.bf16.msra.mxu0 0
        %294 = vmatpush.bf16.msra.mxu0 0
        %295 = vmatpush.bf16.msra.mxu0 %v282
        %296 = vmatpush.bf16.msra.mxu0 %v281
        %297 = vmatmul.bf16.gmra.mxu0 %v287
        %v298 = vpop.f32.mrf.mxu0
        %v299 = vadd.f32 %v271, %v298
        %v300 = vpop.f32.mrf.mxu0
        %301 = vdwg.mxu0
        %v302 = vpack.c.bf16 %v299, %v299
        %vm303 = vcmask 257024
        %304 = vst.msk [vmem:[%s254] sm:$0xf] %vm303, %v302
        %306 = vrot.lane.b32.xlu0 %v302, 96
        %v307 = vpop.permute.xlu0 %306
        %309 = vst.msk [vmem:[%s261] sm:$0xf] %vm303, %v307
        %s310 = sand.u32 %s118, 1
        %s311 = scalar_lea.sflag [#allocation4], %s310
        %s312 = sand.u32 %s118, 1
        %s313 = smul.addr %s312, 4
        %s314 = scalar_lea.vmem [#allocation7], %s313
        %s315 = sand.u32 %s146, 1
        %s316 = scalar_lea.sflag [#allocation9], %s315
        %s317 = sand.u32 %s146, 1
        %s318 = smul.addr %s317, 4
        %s319 = scalar_lea.vmem [#allocation8], %s318
        // Predicated region
        $region41: #{tpu_custom_call.1} parent=31 // pred_check
          %p320 = pneg %p128
        $region42: #{tpu_custom_call.1} parent=31 // pred_check_branch
          %322 = sbr.rel (%p320) target = $region44
        $region43: #{tpu_custom_call.1} parent=31 // pred_region
          %324 = vsyncadd %s311, 0
          %s325 = sadd.s32 %s31, %s30
          %s326 = smul.addr %s325, 4
          %s327 = scalar_lea.hbm %s3, %s326
          %s329 = sshll.u32 %s314, 4
          %s330 = int_to_ptr.vmem [resolvable:$true] %s329
          %s331 = sshll.u32 %s327, 4
          %s332 = int_to_ptr.hbm [resolvable:$true] %s331
          %334 = dma.vmem_to_hbm [thread:$0]  %s330, 64, %s332, %s311
        $region44: #{tpu_custom_call.1} parent=31 // pred_fallthru
          _
        // Predicated region
        $region45: #{tpu_custom_call.1} parent=31 // pred_check
          %p335 = pneg %p156
        $region46: #{tpu_custom_call.1} parent=31 // pred_check_branch
          %337 = sbr.rel (%p335) target = $region48
        $region47: #{tpu_custom_call.1} parent=31 // pred_region
          %339 = vsyncadd %s316, 0
          %s340 = sadd.s32 %s31, %s30
          %s341 = smul.addr %s340, 4
          %s342 = scalar_lea.hbm %s4, %s341
          %s344 = sshll.u32 %s319, 4
          %s345 = int_to_ptr.vmem [resolvable:$true] %s344
          %s346 = sshll.u32 %s342, 4
          %s347 = int_to_ptr.hbm [resolvable:$true] %s346
          %349 = dma.vmem_to_hbm [thread:$0]  %s345, 64, %s347, %s316
        $region48: #{tpu_custom_call.1} parent=31 // pred_fallthru
          _
      $region32: #{tpu_custom_call.1} parent=5 // pred_fallthru
        _
      %p350 = scmp.le.s32.totalorder 2, %s21
      // Predicated region
      $region49: #{tpu_custom_call.1} parent=5 // pred_check
        %p351 = pneg %p350
      $region50: #{tpu_custom_call.1} parent=5 // pred_check_branch
        %353 = sbr.rel (%p351) target = $region52
      $region51: #{tpu_custom_call.1} parent=5 // pred_region
        %s354 = ssub.s32 %s21, 2
        // Predicated region
        $region53: #{tpu_custom_call.1} parent=51 // pred_check
          %p355 = pneg %p134
        $region54: #{tpu_custom_call.1} parent=51 // pred_check_branch
          %357 = sbr.rel (%p355) target = $region56
        $region55: #{tpu_custom_call.1} parent=51 // pred_region
          %s358 = sand.u32 %s119, 1
          %s359 = scalar_lea.sflag [#allocation4], %s358
          %s360 = sand.u32 %s119, 1
          %s361 = smul.addr %s360, 4
          %s362 = scalar_lea.vmem [#allocation7], %s361
          %364 = dma.done %s359, 64
        $region56: #{tpu_custom_call.1} parent=51 // pred_fallthru
          _
        // Predicated region
        $region57: #{tpu_custom_call.1} parent=51 // pred_check
          %p365 = pneg %p162
        $region58: #{tpu_custom_call.1} parent=51 // pred_check_branch
          %367 = sbr.rel (%p365) target = $region60
        $region59: #{tpu_custom_call.1} parent=51 // pred_region
          %s368 = sand.u32 %s147, 1
          %s369 = scalar_lea.sflag [#allocation9], %s368
          %s370 = sand.u32 %s147, 1
          %s371 = smul.addr %s370, 4
          %s372 = scalar_lea.vmem [#allocation8], %s371
          %374 = dma.done %s369, 64
        $region60: #{tpu_custom_call.1} parent=51 // pred_fallthru
          _
      $region52: #{tpu_custom_call.1} parent=5 // pred_fallthru
        _
    $region6: #{tpu_custom_call.1} parent=1 // loop_footer
      %s25 = sadd.s32 1, %s21
    $region7: #{tpu_custom_call.1} parent=1 // loop_footer_branch
      %20 = sbr.rel target = $region3
    $region8: #{tpu_custom_call.1} parent=1 // loop_exit
      _
    %375 = vsyncpa [#allocation3], 1
    %s376 = scalar_lea.sflag [#allocation3], 1
    %377 = vsyncpa %s376, 1
    %378 = vsyncpa [#allocation6], 1
    %379 = vsyncpa [#allocation4], 1
    %s380 = scalar_lea.sflag [#allocation4], 1
    %381 = vsyncpa %s380, 1
    %382 = vsyncpa [#allocation9], 1
    %s383 = scalar_lea.sflag [#allocation9], 1
    %384 = vsyncpa %s383, 1

</llo_original>
